<compile_context>
chip_gen: v7x
topology: tpu7x:2x2x1
jax: 0.10.0
libtpu: 0.0.40
codegen_flags: <defaults>
</compile_context>

<pallas_src>
import functools

import jax
import jax.numpy as jnp
from jax.experimental import pallas as pl
from jax.experimental.pallas import tpu as pltpu


def _round_up(x, m):
    return (x + m - 1) // m * m


def rnn_kernel(x_ref, len_ref, slab_ref, out_ref, *,
               T, B, D, H, O, r_wih, r_whh, r_bias, r_wlin, r_blin):
    """x_ref: (T*B, D) compute dtype, len_ref: (B,1) int32, slab_ref: packed weights."""
    f32 = jnp.float32

    # Static slices into the packed weight slab (sublane-aligned block starts).
    w_ih = slab_ref[r_wih:r_wih + D, 0:H]                     # (D, H) compute dtype
    w_hh = slab_ref[r_whh:r_whh + H, 0:H]                     # (H, H)
    bias = slab_ref[r_bias:r_bias + 1, 0:H].astype(f32)       # (1, H) == b_ih + b_hh
    cd = w_ih.dtype                                           # compute (MXU) dtype

    # --- Hoisted input projection: one (T*B,D)@(D,H) MXU matmul, one bias add. ---
    gx = jnp.dot(x_ref[...], w_ih, preferred_element_type=f32) + bias   # (T*B, H) f32

    # --- Length masks hoisted off the serial chain (pack_padded_sequence freeze). ---
    lens_bh = jnp.broadcast_to(len_ref[...], (B, H))          # single broadcast
    masks = [jnp.int32(t) < lens_bh for t in range(T)]        # T compares, h-independent

    # --- Serial recurrence: exactly one MXU push per step on the critical path. ---
    # TODO(synk): at production T switch to lax.fori_loop (unroll~8) with gx in VMEM
    # scratch to bound live ranges; T=8 full unroll is the right form here.
    h = jnp.zeros((B, H), f32)
    for t in range(T):
        hh = jnp.dot(h.astype(cd), w_hh, preferred_element_type=f32)
        h_new = jnp.maximum(gx[t * B:(t + 1) * B, :] + hh, 0.0)
        h = jnp.where(masks[t], h_new, h)

    # --- Linear head + log_softmax(dim=1). ---
    w_lin = slab_ref[r_wlin:r_wlin + H, 0:O]                  # (H, O)
    b_lin = slab_ref[r_blin:r_blin + 1, 0:O].astype(f32)      # (1, O)
    logits = jnp.dot(h.astype(cd), w_lin, preferred_element_type=f32) + b_lin
    m = jnp.max(logits, axis=1, keepdims=True)
    z = logits - m
    lse = jnp.log(jnp.sum(jnp.exp(z), axis=1, keepdims=True))
    out_ref[...] = z - lse                                    # (B, O) masked vst: fine at O=8


def rnn_forward(inputs, lengths, params, *, compute_dtype=jnp.float32):
    """inputs: (B, T, D) float32, lengths: (B,) int -> (B, O) float32 log-probs."""
    B, T, D = inputs.shape
    H = params["w_hh"].shape[0]
    O = params["w_lin"].shape[0]
    W = max(H, O)                                             # slab lane width

    # (B, T, D) -> (T*B, D): rows [t*B, (t+1)*B) correspond to timestep t.
    x_flat = (jnp.transpose(inputs, (1, 0, 2))
              .reshape(T * B, D)
              .astype(compute_dtype))

    # TODO(synk): at production sizes move lengths to SMEM via PrefetchScalarGridSpec
    # and bound the recurrence at max(lengths); at T=8 == max(lengths) nothing to skip.
    len_2d = lengths.astype(jnp.int32).reshape(B, 1)

    # Pack all weights/biases into one sublane-aligned slab -> one input DMA.
    def blk(a, rows):
        return jnp.pad(a, ((0, rows - a.shape[0]), (0, W - a.shape[1])))

    d_pad, h_pad = _round_up(D, 8), _round_up(H, 8)
    r_wih = 0
    r_whh = r_wih + d_pad
    r_bias = r_whh + h_pad
    r_wlin = r_bias + 8
    r_blin = r_wlin + h_pad
    slab = jnp.concatenate([
        blk(params["w_ih"].T, d_pad),                                  # (D, H) pre-transposed
        blk(params["w_hh"].T, h_pad),                                  # (H, H)
        blk((params["b_ih"] + params["b_hh"]).reshape(1, H), 8),       # fused bias
        blk(params["w_lin"].T, h_pad),                                 # (H, O)
        blk(params["b_lin"].reshape(1, O), 8),
    ], axis=0).astype(compute_dtype)

    kernel = functools.partial(
        rnn_kernel, T=T, B=B, D=D, H=H, O=O,
        r_wih=r_wih, r_whh=r_whh, r_bias=r_bias, r_wlin=r_wlin, r_blin=r_blin)

    flops = 2 * T * B * (D * H + H * H) + 2 * B * H * O
    transcendentals = B * O + B
    bytes_accessed = (x_flat.size * x_flat.dtype.itemsize
                      + slab.size * slab.dtype.itemsize
                      + len_2d.size * 4 + B * O * 4)

    # Single invocation, whole-array VMEM blocks; the time loop is unrolled in-kernel.
    # TODO(synk): for production scaling, add a batch-parallel grid (v7x 2 TCs) and
    # stream x in T-chunks (time axis "arbitrary", h resident) to fit 64 MiB VMEM.
    vmem = pltpu.MemorySpace.VMEM
    return pl.pallas_call(
        kernel,
        out_shape=jax.ShapeDtypeStruct((B, O), jnp.float32),
        in_specs=[pl.BlockSpec(memory_space=vmem)] * 3,
        out_specs=pl.BlockSpec(memory_space=vmem),
        cost_estimate=pl.CostEstimate(
            flops=flops,
            transcendentals=transcendentals,
            bytes_accessed=bytes_accessed),
    )(x_flat, len_2d, slab)


def rnn_reference(inputs, lengths, params):
    """Pure-JAX reference with identical semantics (for validation)."""
    B, T, D = inputs.shape
    H = params["w_hh"].shape[0]
    h = jnp.zeros((B, H), jnp.float32)
    for t in range(T):
        x_t = inputs[:, t, :]
        pre = (x_t @ params["w_ih"].T + params["b_ih"]
               + h @ params["w_hh"].T + params["b_hh"])
        h_new = jnp.maximum(pre, 0.0)
        h = jnp.where((t < lengths)[:, None], h_new, h)
    logits = h @ params["w_lin"].T + params["b_lin"]
    return jax.nn.log_softmax(logits, axis=1)


def init_params(key, input_dim, hidden_dim, output_dim):
    ks = jax.random.split(key, 6)
    s = 1.0 / jnp.sqrt(hidden_dim)
    u = lambda k, shape: jax.random.uniform(k, shape, jnp.float32, -s, s)
    return {
        "w_ih": u(ks[0], (hidden_dim, input_dim)),
        "w_hh": u(ks[1], (hidden_dim, hidden_dim)),
        "b_ih": u(ks[2], (hidden_dim,)),
        "b_hh": u(ks[3], (hidden_dim,)),
        "w_lin": u(ks[4], (output_dim, hidden_dim)),
        "b_lin": u(ks[5], (output_dim,)),
    }


if __name__ == "__main__":
    # Small shapes consistent with the module's forward: batch=2, seq=8,
    # input_dim=4, hidden_dim=32, output_dim=8.
    B, T, D, H, O = 2, 8, 4, 32, 8

    key = jax.random.PRNGKey(0)
    k_x, k_p = jax.random.split(key)
    inputs = jax.random.normal(k_x, (B, T, D), jnp.float32)
    lengths = jnp.array([8, 5], dtype=jnp.int32)   # variable-length sequences
    params = init_params(k_p, D, H, O)

    # TODO(synk): LSTM branch (lstm=True) not implemented; default nn.RNN(relu) path only.
    ref = rnn_reference(inputs, lengths, params)

    # f32 path: matches the f32 JAX reference tightly (same default dot precision).
    out = jax.block_until_ready(rnn_forward(inputs, lengths, params))
    assert out.shape == (B, O)
    assert jnp.allclose(out, ref, atol=1e-5, rtol=1e-5)

    # bf16 MXU-operand path (f32 accumulation): production-throughput variant; sanity
    # check against the f32 reference with a loose tolerance.
    out_bf16 = jax.block_until_ready(
        rnn_forward(inputs, lengths, params, compute_dtype=jnp.bfloat16))
    assert out_bf16.shape == (B, O)
    assert jnp.allclose(out_bf16, ref, atol=1e-1, rtol=1e-1)

    print("KERNEL_OK")
</pallas_src>

<mosaic_0001>
module attributes {stable_mosaic.version = 11 : i64} {
  func.func @rnn_kernel(%arg0: memref<16x4xf32, #tpu.memory_space<vmem>>, %arg1: memref<2x1xi32, #tpu.memory_space<vmem>>, %arg2: memref<88x32xf32, #tpu.memory_space<vmem>>, %arg3: memref<2x8xf32, #tpu.memory_space<vmem>>) attributes {dimension_semantics = [], scalar_prefetch = 0 : i64, scratch_operands = 0 : i64, tpu.core_type = #tpu.core_type<tc>} {
    %c0 = arith.constant 0 : index
    %c0_0 = arith.constant 0 : index
    %0 = vector.load %arg2[%c0, %c0_0] : memref<88x32xf32, #tpu.memory_space<vmem>>, vector<4x32xf32>
    %c8 = arith.constant 8 : index
    %c0_1 = arith.constant 0 : index
    %1 = vector.load %arg2[%c8, %c0_1] : memref<88x32xf32, #tpu.memory_space<vmem>>, vector<32x32xf32>
    %c40 = arith.constant 40 : index
    %c0_2 = arith.constant 0 : index
    %2 = vector.load %arg2[%c40, %c0_2] : memref<88x32xf32, #tpu.memory_space<vmem>>, vector<1x32xf32>
    %c0_3 = arith.constant 0 : index
    %c0_4 = arith.constant 0 : index
    %3 = vector.load %arg0[%c0_3, %c0_4] : memref<16x4xf32, #tpu.memory_space<vmem>>, vector<16x4xf32>
    %cst = arith.constant dense<0.000000e+00> : vector<16x32xf32>
    %4 = tpu.matmul %3, %0, %cst {dimension_numbers = #tpu.dot_dimension_numbers<[1], [0], [0], [1], [0, 0, 1, 1], [], []>} : vector<16x4xf32>, vector<4x32xf32>, vector<16x32xf32> -> vector<16x32xf32>
    %5 = vector.broadcast %2 : vector<1x32xf32> to vector<16x32xf32>
    %6 = arith.addf %4, %5 : vector<16x32xf32>
    %c0_5 = arith.constant 0 : index
    %c0_6 = arith.constant 0 : index
    %7 = vector.load %arg1[%c0_5, %c0_6] : memref<2x1xi32, #tpu.memory_space<vmem>>, vector<2x1xi32>
    %8 = vector.shape_cast %7 : vector<2x1xi32> to vector<2x1xi32>
    %9 = vector.broadcast %8 : vector<2x1xi32> to vector<2x32xi32>
    %c0_i32 = arith.constant 0 : i32
    %10 = vector.broadcast %c0_i32 : i32 to vector<2x32xi32>
    %11 = arith.cmpi slt, %10, %9 : vector<2x32xi32>
    %c1_i32 = arith.constant 1 : i32
    %12 = vector.broadcast %c1_i32 : i32 to vector<2x32xi32>
    %13 = arith.cmpi slt, %12, %9 : vector<2x32xi32>
    %c2_i32 = arith.constant 2 : i32
    %14 = vector.broadcast %c2_i32 : i32 to vector<2x32xi32>
    %15 = arith.cmpi slt, %14, %9 : vector<2x32xi32>
    %c3_i32 = arith.constant 3 : i32
    %16 = vector.broadcast %c3_i32 : i32 to vector<2x32xi32>
    %17 = arith.cmpi slt, %16, %9 : vector<2x32xi32>
    %c4_i32 = arith.constant 4 : i32
    %18 = vector.broadcast %c4_i32 : i32 to vector<2x32xi32>
    %19 = arith.cmpi slt, %18, %9 : vector<2x32xi32>
    %c5_i32 = arith.constant 5 : i32
    %20 = vector.broadcast %c5_i32 : i32 to vector<2x32xi32>
    %21 = arith.cmpi slt, %20, %9 : vector<2x32xi32>
    %c6_i32 = arith.constant 6 : i32
    %22 = vector.broadcast %c6_i32 : i32 to vector<2x32xi32>
    %23 = arith.cmpi slt, %22, %9 : vector<2x32xi32>
    %c7_i32 = arith.constant 7 : i32
    %24 = vector.broadcast %c7_i32 : i32 to vector<2x32xi32>
    %25 = arith.cmpi slt, %24, %9 : vector<2x32xi32>
    %cst_7 = arith.constant 0.000000e+00 : f32
    %26 = vector.broadcast %cst_7 : f32 to vector<2x32xf32>
    %cst_8 = arith.constant dense<0.000000e+00> : vector<2x32xf32>
    %27 = tpu.matmul %26, %1, %cst_8 {dimension_numbers = #tpu.dot_dimension_numbers<[1], [0], [0], [1], [0, 0, 1, 1], [], []>} : vector<2x32xf32>, vector<32x32xf32>, vector<2x32xf32> -> vector<2x32xf32>
    %28 = vector.extract_strided_slice %6 {offsets = [0, 0], sizes = [2, 32], strides = [1, 1]} : vector<16x32xf32> to vector<2x32xf32>
    %29 = arith.addf %28, %27 : vector<2x32xf32>
    %cst_9 = arith.constant 0.000000e+00 : f32
    %30 = vector.broadcast %cst_9 : f32 to vector<2x32xf32>
    %31 = arith.maximumf %29, %30 : vector<2x32xf32>
    %32 = arith.select %11, %31, %26 : vector<2x32xi1>, vector<2x32xf32>
    %cst_10 = arith.constant dense<0.000000e+00> : vector<2x32xf32>
    %33 = tpu.matmul %32, %1, %cst_10 {dimension_numbers = #tpu.dot_dimension_numbers<[1], [0], [0], [1], [0, 0, 1, 1], [], []>} : vector<2x32xf32>, vector<32x32xf32>, vector<2x32xf32> -> vector<2x32xf32>
    %34 = vector.extract_strided_slice %6 {offsets = [2, 0], sizes = [2, 32], strides = [1, 1]} : vector<16x32xf32> to vector<2x32xf32>
    %35 = arith.addf %34, %33 : vector<2x32xf32>
    %cst_11 = arith.constant 0.000000e+00 : f32
    %36 = vector.broadcast %cst_11 : f32 to vector<2x32xf32>
    %37 = arith.maximumf %35, %36 : vector<2x32xf32>
    %38 = arith.select %13, %37, %32 : vector<2x32xi1>, vector<2x32xf32>
    %cst_12 = arith.constant dense<0.000000e+00> : vector<2x32xf32>
    %39 = tpu.matmul %38, %1, %cst_12 {dimension_numbers = #tpu.dot_dimension_numbers<[1], [0], [0], [1], [0, 0, 1, 1], [], []>} : vector<2x32xf32>, vector<32x32xf32>, vector<2x32xf32> -> vector<2x32xf32>
    %40 = vector.extract_strided_slice %6 {offsets = [4, 0], sizes = [2, 32], strides = [1, 1]} : vector<16x32xf32> to vector<2x32xf32>
    %41 = arith.addf %40, %39 : vector<2x32xf32>
    %cst_13 = arith.constant 0.000000e+00 : f32
    %42 = vector.broadcast %cst_13 : f32 to vector<2x32xf32>
    %43 = arith.maximumf %41, %42 : vector<2x32xf32>
    %44 = arith.select %15, %43, %38 : vector<2x32xi1>, vector<2x32xf32>
    %cst_14 = arith.constant dense<0.000000e+00> : vector<2x32xf32>
    %45 = tpu.matmul %44, %1, %cst_14 {dimension_numbers = #tpu.dot_dimension_numbers<[1], [0], [0], [1], [0, 0, 1, 1], [], []>} : vector<2x32xf32>, vector<32x32xf32>, vector<2x32xf32> -> vector<2x32xf32>
    %46 = vector.extract_strided_slice %6 {offsets = [6, 0], sizes = [2, 32], strides = [1, 1]} : vector<16x32xf32> to vector<2x32xf32>
    %47 = arith.addf %46, %45 : vector<2x32xf32>
    %cst_15 = arith.constant 0.000000e+00 : f32
    %48 = vector.broadcast %cst_15 : f32 to vector<2x32xf32>
    %49 = arith.maximumf %47, %48 : vector<2x32xf32>
    %50 = arith.select %17, %49, %44 : vector<2x32xi1>, vector<2x32xf32>
    %cst_16 = arith.constant dense<0.000000e+00> : vector<2x32xf32>
    %51 = tpu.matmul %50, %1, %cst_16 {dimension_numbers = #tpu.dot_dimension_numbers<[1], [0], [0], [1], [0, 0, 1, 1], [], []>} : vector<2x32xf32>, vector<32x32xf32>, vector<2x32xf32> -> vector<2x32xf32>
    %52 = vector.extract_strided_slice %6 {offsets = [8, 0], sizes = [2, 32], strides = [1, 1]} : vector<16x32xf32> to vector<2x32xf32>
    %53 = arith.addf %52, %51 : vector<2x32xf32>
    %cst_17 = arith.constant 0.000000e+00 : f32
    %54 = vector.broadcast %cst_17 : f32 to vector<2x32xf32>
    %55 = arith.maximumf %53, %54 : vector<2x32xf32>
    %56 = arith.select %19, %55, %50 : vector<2x32xi1>, vector<2x32xf32>
    %cst_18 = arith.constant dense<0.000000e+00> : vector<2x32xf32>
    %57 = tpu.matmul %56, %1, %cst_18 {dimension_numbers = #tpu.dot_dimension_numbers<[1], [0], [0], [1], [0, 0, 1, 1], [], []>} : vector<2x32xf32>, vector<32x32xf32>, vector<2x32xf32> -> vector<2x32xf32>
    %58 = vector.extract_strided_slice %6 {offsets = [10, 0], sizes = [2, 32], strides = [1, 1]} : vector<16x32xf32> to vector<2x32xf32>
    %59 = arith.addf %58, %57 : vector<2x32xf32>
    %cst_19 = arith.constant 0.000000e+00 : f32
    %60 = vector.broadcast %cst_19 : f32 to vector<2x32xf32>
    %61 = arith.maximumf %59, %60 : vector<2x32xf32>
    %62 = arith.select %21, %61, %56 : vector<2x32xi1>, vector<2x32xf32>
    %cst_20 = arith.constant dense<0.000000e+00> : vector<2x32xf32>
    %63 = tpu.matmul %62, %1, %cst_20 {dimension_numbers = #tpu.dot_dimension_numbers<[1], [0], [0], [1], [0, 0, 1, 1], [], []>} : vector<2x32xf32>, vector<32x32xf32>, vector<2x32xf32> -> vector<2x32xf32>
    %64 = vector.extract_strided_slice %6 {offsets = [12, 0], sizes = [2, 32], strides = [1, 1]} : vector<16x32xf32> to vector<2x32xf32>
    %65 = arith.addf %64, %63 : vector<2x32xf32>
    %cst_21 = arith.constant 0.000000e+00 : f32
    %66 = vector.broadcast %cst_21 : f32 to vector<2x32xf32>
    %67 = arith.maximumf %65, %66 : vector<2x32xf32>
    %68 = arith.select %23, %67, %62 : vector<2x32xi1>, vector<2x32xf32>
    %cst_22 = arith.constant dense<0.000000e+00> : vector<2x32xf32>
    %69 = tpu.matmul %68, %1, %cst_22 {dimension_numbers = #tpu.dot_dimension_numbers<[1], [0], [0], [1], [0, 0, 1, 1], [], []>} : vector<2x32xf32>, vector<32x32xf32>, vector<2x32xf32> -> vector<2x32xf32>
    %70 = vector.extract_strided_slice %6 {offsets = [14, 0], sizes = [2, 32], strides = [1, 1]} : vector<16x32xf32> to vector<2x32xf32>
    %71 = arith.addf %70, %69 : vector<2x32xf32>
    %cst_23 = arith.constant 0.000000e+00 : f32
    %72 = vector.broadcast %cst_23 : f32 to vector<2x32xf32>
    %73 = arith.maximumf %71, %72 : vector<2x32xf32>
    %74 = arith.select %25, %73, %68 : vector<2x32xi1>, vector<2x32xf32>
    %c48 = arith.constant 48 : index
    %c0_24 = arith.constant 0 : index
    %75 = vector.load %arg2[%c48, %c0_24] : memref<88x32xf32, #tpu.memory_space<vmem>>, vector<32x8xf32>
    %c80 = arith.constant 80 : index
    %c0_25 = arith.constant 0 : index
    %76 = vector.load %arg2[%c80, %c0_25] : memref<88x32xf32, #tpu.memory_space<vmem>>, vector<1x8xf32>
    %cst_26 = arith.constant dense<0.000000e+00> : vector<2x8xf32>
    %77 = tpu.matmul %74, %75, %cst_26 {dimension_numbers = #tpu.dot_dimension_numbers<[1], [0], [0], [1], [0, 0, 1, 1], [], []>} : vector<2x32xf32>, vector<32x8xf32>, vector<2x8xf32> -> vector<2x8xf32>
    %78 = vector.broadcast %76 : vector<1x8xf32> to vector<2x8xf32>
    %79 = arith.addf %77, %78 : vector<2x8xf32>
    %cst_27 = arith.constant dense<0xFF800000> : vector<2xf32>
    %80 = vector.multi_reduction <maximumf>, %79, %cst_27 [1] : vector<2x8xf32> to vector<2xf32>
    %81 = vector.shape_cast %80 : vector<2xf32> to vector<2x1xf32>
    %82 = vector.broadcast %81 : vector<2x1xf32> to vector<2x8xf32>
    %83 = arith.subf %79, %82 : vector<2x8xf32>
    %84 = math.exp %83 : vector<2x8xf32>
    %cst_28 = arith.constant dense<0.000000e+00> : vector<2xf32>
    %85 = vector.multi_reduction <add>, %84, %cst_28 [1] : vector<2x8xf32> to vector<2xf32>
    %86 = vector.shape_cast %85 : vector<2xf32> to vector<2x1xf32>
    %87 = math.log %86 : vector<2x1xf32>
    %88 = vector.broadcast %87 : vector<2x1xf32> to vector<2x8xf32>
    %89 = arith.subf %83, %88 : vector<2x8xf32>
    %c0_29 = arith.constant 0 : index
    %c0_30 = arith.constant 0 : index
    %90 = vector.load %arg3[%c0_29, %c0_30] : memref<2x8xf32, #tpu.memory_space<vmem>>, vector<2x8xf32>
    tpu.vector_store %arg3[%c0_29, %c0_30], %89 {strides = array<i32>} : memref<2x8xf32, #tpu.memory_space<vmem>>, vector<2x8xf32>,
    return
  }
}

</mosaic_0001>

<llo_original>
// kernel: tpu_custom_call.1
$region0: #{tpu_custom_call.1}
  #allocation0 [shape = 'u32[]', space=smem, size = 0x4, offset = 0x4, fixed_abs, tag = 'smem constant byte address 0x4 - core index']
  #allocation1 [shape = 'u32[144,128]{1,0:T(1,128)}', space=vmem, size = 0x12000, scoped, tag = 'internal scratch']
  %s0 = inlined_call_operand.vmem [shape: f32[16,4], index: 0, kind: input, shape index: {}]
  %s1 = inlined_call_operand.vmem [shape: s32[2,1], index: 1, kind: input, shape index: {}]
  %s2 = inlined_call_operand.vmem [shape: f32[88,32], index: 2, kind: input, shape index: {}]
  %s3 = inlined_call_operand.hbm [shape: f32[2,8], index: 3, kind: output, shape index: {}]
  %s4 = sld [smem:[#allocation0]]
  $region22: #{tpu_custom_call.1} parent=0
    _
  %s6 = ssub.s32 1, %s4
  %s7 = scalar_select 0, %s6, %s4
  $region1: #{tpu_custom_call.1} parent=0
    #allocation2 [shape = 'u8[1024]{0}', space=vmem, size = 0x400, scoped, tag = 'output window, operand 0, single buffered']
    #allocation3 [shape = 's32[1]{0}', space=sflag, size = 0x4, scoped, tag = 'scoped memory for tpu_custom_call.1']
    %8 = vsyncpa [#allocation3], 0
    // Predicated region
    $region2: #{tpu_custom_call.1} parent=1 // pred_check
      _
    $region3: #{tpu_custom_call.1} parent=1 // pred_check_branch
      %10 = sbr.rel (0) target = $region5
    $region4: #{tpu_custom_call.1} parent=1 // pred_region
      _
    $region5: #{tpu_custom_call.1} parent=1 // pred_fallthru
      _
    // Predicated region
    $region6: #{tpu_custom_call.1} parent=1 // pred_check
      _
    $region7: #{tpu_custom_call.1} parent=1 // pred_check_branch
      %12 = sbr.rel (0) target = $region9
    $region8: #{tpu_custom_call.1} parent=1 // pred_region
      _
    $region9: #{tpu_custom_call.1} parent=1 // pred_fallthru
      _
    // Predicated region
    $region10: #{tpu_custom_call.1} parent=1 // pred_check
      _
    $region11: #{tpu_custom_call.1} parent=1 // pred_check_branch
      %14 = sbr.rel (0) target = $region13
    $region12: #{tpu_custom_call.1} parent=1 // pred_region
      _
    $region13: #{tpu_custom_call.1} parent=1 // pred_fallthru
      _
    %v15 = vld [vmem:[%s2] sm:$0xf]
    %v16 = vld [vmem:[%s2 + $0x8] sm:$0xff]
    %v17 = vld [vmem:[%s2 + $0x10] sm:$0xff]
    %v18 = vld [vmem:[%s2 + $0x18] sm:$0xff]
    %v19 = vld [vmem:[%s2 + $0x20] sm:$0xff]
    %v20 = vld [vmem:[%s2 + $0x28] sm:$0x1]
    %v21 = vld [vmem:[%s0] sm:$0xff]
    %v22 = vld [vmem:[%s0 + $0x8] sm:$0xff]
    %v23 = vlaneseq
    %v24 = vshrl.u32 %v23, 7
    %v25 = vsub.s32 0, %v24
    %v26 = vrot.slane %v20, %v25
    %vm27 = vcmask 31744
    %v29 = vsel %vm27, %v21, 0
    %v32 = vsel %vm27, %v22, 0
    %vm34 = vcmask 1043456
    %v36 = vsel %vm34, %v15, 0
    %38 = vmatprep.subr.mxu0 0.0
    %39 = vmatpush1.msra.mxu0 %v36
    %40 = vmatprep.subr.mxu0 0.0
    %41 = vmatpush1.msra.mxu0 0.0
    %42 = vmatprep.subr.mxu0 0.0
    %43 = vmatpush1.msra.mxu0 0.0
    %44 = vmatprep.subr.mxu0 0.0
    %45 = vmatpush1.msra.mxu0 0.0
    %46 = vmatprep.subr.mxu0 0.0
    %47 = vmatpush1.msra.mxu0 0.0
    %48 = vmatprep.subr.mxu0 0.0
    %49 = vmatpush1.msra.mxu0 0.0
    %50 = vmatprep.subr.mxu0 0.0
    %51 = vmatpush1.msra.mxu0 0.0
    %52 = vmatprep.subr.mxu0 0.0
    %53 = vmatpush1.msra.mxu0 0.0
    %54 = vmatprep.subr.mxu0 0.0
    %55 = vmatpush1.msra.mxu0 0.0
    %56 = vmatprep.subr.mxu0 0.0
    %57 = vmatpush1.msra.mxu0 0.0
    %58 = vmatprep.subr.mxu0 0.0
    %59 = vmatpush1.msra.mxu0 0.0
    %60 = vmatprep.subr.mxu0 0.0
    %61 = vmatpush1.msra.mxu0 0.0
    %62 = vmatprep.subr.mxu0 0.0
    %63 = vmatpush1.msra.mxu0 0.0
    %64 = vmatprep.subr.mxu0 0.0
    %65 = vmatpush1.msra.mxu0 0.0
    %66 = vmatprep.subr.mxu0 0.0
    %67 = vmatpush1.msra.mxu0 0.0
    %68 = vmatprep.subr.mxu0 0.0
    %69 = vmatpush1.msra.mxu0 0.0
    %70 = vmatprep.subr.mxu0 0.0
    %71 = vmatpush1.msra.mxu0 0.0
    %72 = vmatprep.subr.mxu0 0.0
    %73 = vmatpush1.msra.mxu0 0.0
    %74 = vmatprep.subr.mxu0 0.0
    %75 = vmatpush1.msra.mxu0 0.0
    %76 = vmatprep.subr.mxu0 0.0
    %77 = vmatpush1.msra.mxu0 0.0
    %78 = vmatprep.subr.mxu0 0.0
    %79 = vmatpush1.msra.mxu0 0.0
    %80 = vmatprep.subr.mxu0 0.0
    %81 = vmatpush1.msra.mxu0 0.0
    %82 = vmatprep.subr.mxu0 0.0
    %83 = vmatpush1.msra.mxu0 0.0
    %84 = vmatprep.subr.mxu0 0.0
    %85 = vmatpush1.msra.mxu0 0.0
    %86 = vmatprep.subr.mxu0 0.0
    %87 = vmatpush1.msra.mxu0 0.0
    %88 = vmatprep.subr.mxu0 0.0
    %89 = vmatpush1.msra.mxu0 0.0
    %90 = vmatprep.subr.mxu0 0.0
    %91 = vmatpush1.msra.mxu0 0.0
    %92 = vmatprep.subr.mxu0 0.0
    %93 = vmatpush1.msra.mxu0 0.0
    %94 = vmatprep.subr.mxu0 0.0
    %95 = vmatpush1.msra.mxu0 0.0
    %96 = vmatprep.subr.mxu0 0.0
    %97 = vmatpush1.msra.mxu0 0.0
    %98 = vmatprep.subr.mxu0 0.0
    %99 = vmatpush1.msra.mxu0 0.0
    %100 = vmatprep.subr.mxu0 0.0
    %101 = vmatpush1.msra.mxu0 0.0
    %102 = vmatprep.mubr.f32.mxu0 0.0
    %103 = vmatmul.mubr.f32.gmra.mrb[0].mxu0 %v29
    %v104 = vpop.f32.mrb[0].mxu0
    %v105 = vadd.f32 %v26, %v104
    %v106 = vpop.f32.mrb[0].mxu0
    %107 = vmatprep.mubr.f32.mxu0 0.0
    %108 = vmatmul.mubr.f32.gmra.mrb[0].mxu0 %v32
    %v109 = vpop.f32.mrb[0].mxu0
    %v110 = vadd.f32 %v26, %v109
    %v111 = vpop.f32.mrb[0].mxu0
    %112 = vdwg.mxu0
    %v113 = vld [vmem:[%s1] sm:$0x3]
    %114 = vset.pattern.permute.xlu0 0
    %115 = vperm.xlu0 %114, %v113
    %v116 = vpop.permute.xlu0 %115
    %vm117 = vcmp.gt.s32.totalorder %v116, 0
    %vm118 = vcmp.gt.s32.totalorder %v116, 1
    %vm119 = vcmp.gt.s32.totalorder %v116, 2
    %vm120 = vcmp.gt.s32.totalorder %v116, 3
    %vm121 = vcmp.gt.s32.totalorder %v116, 4
    %vm122 = vcmp.gt.s32.totalorder %v116, 5
    %vm123 = vcmp.gt.s32.totalorder %v116, 6
    %vm124 = vcmp.gt.s32.totalorder %v116, 7
    %vm125 = vcmask 261120
    %v127 = vsel %vm125, 0.0, 0
    %129 = vmatprep.subr.mxu0 0.0
    %130 = vmatpush1.msra.mxu0 %v16
    %131 = vmatprep.subr.mxu0 0.0
    %132 = vmatpush1.msra.mxu0 %v17
    %133 = vmatprep.subr.mxu0 0.0
    %134 = vmatpush1.msra.mxu0 %v18
    %135 = vmatprep.subr.mxu0 0.0
    %136 = vmatpush1.msra.mxu0 %v19
    %137 = vmatprep.subr.mxu0 0.0
    %138 = vmatpush1.msra.mxu0 0.0
    %139 = vmatprep.subr.mxu0 0.0
    %140 = vmatpush1.msra.mxu0 0.0
    %141 = vmatprep.subr.mxu0 0.0
    %142 = vmatpush1.msra.mxu0 0.0
    %143 = vmatprep.subr.mxu0 0.0
    %144 = vmatpush1.msra.mxu0 0.0
    %145 = vmatprep.subr.mxu0 0.0
    %146 = vmatpush1.msra.mxu0 0.0
    %147 = vmatprep.subr.mxu0 0.0
    %148 = vmatpush1.msra.mxu0 0.0
    %149 = vmatprep.subr.mxu0 0.0
    %150 = vmatpush1.msra.mxu0 0.0
    %151 = vmatprep.subr.mxu0 0.0
    %152 = vmatpush1.msra.mxu0 0.0
    %153 = vmatprep.subr.mxu0 0.0
    %154 = vmatpush1.msra.mxu0 0.0
    %155 = vmatprep.subr.mxu0 0.0
    %156 = vmatpush1.msra.mxu0 0.0
    %157 = vmatprep.subr.mxu0 0.0
    %158 = vmatpush1.msra.mxu0 0.0
    %159 = vmatprep.subr.mxu0 0.0
    %160 = vmatpush1.msra.mxu0 0.0
    %161 = vmatprep.subr.mxu0 0.0
    %162 = vmatpush1.msra.mxu0 0.0
    %163 = vmatprep.subr.mxu0 0.0
    %164 = vmatpush1.msra.mxu0 0.0
    %165 = vmatprep.subr.mxu0 0.0
    %166 = vmatpush1.msra.mxu0 0.0
    %167 = vmatprep.subr.mxu0 0.0
    %168 = vmatpush1.msra.mxu0 0.0
    %169 = vmatprep.subr.mxu0 0.0
    %170 = vmatpush1.msra.mxu0 0.0
    %171 = vmatprep.subr.mxu0 0.0
    %172 = vmatpush1.msra.mxu0 0.0
    %173 = vmatprep.subr.mxu0 0.0
    %174 = vmatpush1.msra.mxu0 0.0
    %175 = vmatprep.subr.mxu0 0.0
    %176 = vmatpush1.msra.mxu0 0.0
    %177 = vmatprep.subr.mxu0 0.0
    %178 = vmatpush1.msra.mxu0 0.0
    %179 = vmatprep.subr.mxu0 0.0
    %180 = vmatpush1.msra.mxu0 0.0
    %181 = vmatprep.subr.mxu0 0.0
    %182 = vmatpush1.msra.mxu0 0.0
    %183 = vmatprep.subr.mxu0 0.0
    %184 = vmatpush1.msra.mxu0 0.0
    %185 = vmatprep.subr.mxu0 0.0
    %186 = vmatpush1.msra.mxu0 0.0
    %187 = vmatprep.subr.mxu0 0.0
    %188 = vmatpush1.msra.mxu0 0.0
    %189 = vmatprep.subr.mxu0 0.0
    %190 = vmatpush1.msra.mxu0 0.0
    %191 = vmatprep.subr.mxu0 0.0
    %192 = vmatpush1.msra.mxu0 0.0
    %193 = vmatprep.mubr.f32.mxu0 0.0
    %194 = vmatmul.mubr.f32.gmra.mrb[0].mxu0 %v127
    %v195 = vpop.f32.mrb[0].mxu0
    %v196 = vadd.f32 0.0, %v195
    %v197 = vpop.f32.mrb[0].mxu0
    %198 = vdwg.mxu0
    %v199 = vadd.f32 %v105, %v196
    %v200 = vmax.f32 %v199, 0.0
    %v201 = vsel %vm117, %v200, 0.0
    %v203 = vsel %vm125, %v201, 0
    %205 = vmatprep.subr.mxu0 0.0
    %206 = vmatpush1.msra.mxu0 %v16
    %207 = vmatprep.subr.mxu0 0.0
    %208 = vmatpush1.msra.mxu0 %v17
    %209 = vmatprep.subr.mxu0 0.0
    %210 = vmatpush1.msra.mxu0 %v18
    %211 = vmatprep.subr.mxu0 0.0
    %212 = vmatpush1.msra.mxu0 %v19
    %213 = vmatprep.subr.mxu0 0.0
    %214 = vmatpush1.msra.mxu0 0.0
    %215 = vmatprep.subr.mxu0 0.0
    %216 = vmatpush1.msra.mxu0 0.0
    %217 = vmatprep.subr.mxu0 0.0
    %218 = vmatpush1.msra.mxu0 0.0
    %219 = vmatprep.subr.mxu0 0.0
    %220 = vmatpush1.msra.mxu0 0.0
    %221 = vmatprep.subr.mxu0 0.0
    %222 = vmatpush1.msra.mxu0 0.0
    %223 = vmatprep.subr.mxu0 0.0
    %224 = vmatpush1.msra.mxu0 0.0
    %225 = vmatprep.subr.mxu0 0.0
    %226 = vmatpush1.msra.mxu0 0.0
    %227 = vmatprep.subr.mxu0 0.0
    %228 = vmatpush1.msra.mxu0 0.0
    %229 = vmatprep.subr.mxu0 0.0
    %230 = vmatpush1.msra.mxu0 0.0
    %231 = vmatprep.subr.mxu0 0.0
    %232 = vmatpush1.msra.mxu0 0.0
    %233 = vmatprep.subr.mxu0 0.0
    %234 = vmatpush1.msra.mxu0 0.0
    %235 = vmatprep.subr.mxu0 0.0
    %236 = vmatpush1.msra.mxu0 0.0
    %237 = vmatprep.subr.mxu0 0.0
    %238 = vmatpush1.msra.mxu0 0.0
    %239 = vmatprep.subr.mxu0 0.0
    %240 = vmatpush1.msra.mxu0 0.0
    %241 = vmatprep.subr.mxu0 0.0
    %242 = vmatpush1.msra.mxu0 0.0
    %243 = vmatprep.subr.mxu0 0.0
    %244 = vmatpush1.msra.mxu0 0.0
    %245 = vmatprep.subr.mxu0 0.0
    %246 = vmatpush1.msra.mxu0 0.0
    %247 = vmatprep.subr.mxu0 0.0
    %248 = vmatpush1.msra.mxu0 0.0
    %249 = vmatprep.subr.mxu0 0.0
    %250 = vmatpush1.msra.mxu0 0.0
    %251 = vmatprep.subr.mxu0 0.0
    %252 = vmatpush1.msra.mxu0 0.0
    %253 = vmatprep.subr.mxu0 0.0
    %254 = vmatpush1.msra.mxu0 0.0
    %255 = vmatprep.subr.mxu0 0.0
    %256 = vmatpush1.msra.mxu0 0.0
    %257 = vmatprep.subr.mxu0 0.0
    %258 = vmatpush1.msra.mxu0 0.0
    %259 = vmatprep.subr.mxu0 0.0
    %260 = vmatpush1.msra.mxu0 0.0
    %261 = vmatprep.subr.mxu0 0.0
    %262 = vmatpush1.msra.mxu0 0.0
    %263 = vmatprep.subr.mxu0 0.0
    %264 = vmatpush1.msra.mxu0 0.0
    %265 = vmatprep.subr.mxu0 0.0
    %266 = vmatpush1.msra.mxu0 0.0
    %267 = vmatprep.subr.mxu0 0.0
    %268 = vmatpush1.msra.mxu0 0.0
    %269 = vmatprep.mubr.f32.mxu0 0.0
    %270 = vmatmul.mubr.f32.gmra.mrb[0].mxu0 %v203
    %v271 = vpop.f32.mrb[0].mxu0
    %v272 = vadd.f32 0.0, %v271
    %v273 = vpop.f32.mrb[0].mxu0
    %274 = vdwg.mxu0
    %v276 = vrot.slane %v272, 6
    %v278 = vadd.f32 %v105, %v276
    %v279 = vmax.f32 %v278, 0.0
    %v281 = vrot.slane %v279, 2
    %v283 = vsel %vm118, %v281, %v201
    %v285 = vsel %vm125, %v283, 0
    %287 = vmatprep.subr.mxu0 0.0
    %288 = vmatpush1.msra.mxu0 %v16
    %289 = vmatprep.subr.mxu0 0.0
    %290 = vmatpush1.msra.mxu0 %v17
    %291 = vmatprep.subr.mxu0 0.0
    %292 = vmatpush1.msra.mxu0 %v18
    %293 = vmatprep.subr.mxu0 0.0
    %294 = vmatpush1.msra.mxu0 %v19
    %295 = vmatprep.subr.mxu0 0.0
    %296 = vmatpush1.msra.mxu0 0.0
    %297 = vmatprep.subr.mxu0 0.0
    %298 = vmatpush1.msra.mxu0 0.0
    %299 = vmatprep.subr.mxu0 0.0
    %300 = vmatpush1.msra.mxu0 0.0
    %301 = vmatprep.subr.mxu0 0.0
    %302 = vmatpush1.msra.mxu0 0.0
    %303 = vmatprep.subr.mxu0 0.0
    %304 = vmatpush1.msra.mxu0 0.0
    %305 = vmatprep.subr.mxu0 0.0
    %306 = vmatpush1.msra.mxu0 0.0
    %307 = vmatprep.subr.mxu0 0.0
    %308 = vmatpush1.msra.mxu0 0.0
    %309 = vmatprep.subr.mxu0 0.0
    %310 = vmatpush1.msra.mxu0 0.0
    %311 = vmatprep.subr.mxu0 0.0
    %312 = vmatpush1.msra.mxu0 0.0
    %313 = vmatprep.subr.mxu0 0.0
    %314 = vmatpush1.msra.mxu0 0.0
    %315 = vmatprep.subr.mxu0 0.0
    %316 = vmatpush1.msra.mxu0 0.0
    %317 = vmatprep.subr.mxu0 0.0
    %318 = vmatpush1.msra.mxu0 0.0
    %319 = vmatprep.subr.mxu0 0.0
    %320 = vmatpush1.msra.mxu0 0.0
    %321 = vmatprep.subr.mxu0 0.0
    %322 = vmatpush1.msra.mxu0 0.0
    %323 = vmatprep.subr.mxu0 0.0
    %324 = vmatpush1.msra.mxu0 0.0
    %325 = vmatprep.subr.mxu0 0.0
    %326 = vmatpush1.msra.mxu0 0.0
    %327 = vmatprep.subr.mxu0 0.0
    %328 = vmatpush1.msra.mxu0 0.0
    %329 = vmatprep.subr.mxu0 0.0
    %330 = vmatpush1.msra.mxu0 0.0
    %331 = vmatprep.subr.mxu0 0.0
    %332 = vmatpush1.msra.mxu0 0.0
    %333 = vmatprep.subr.mxu0 0.0
    %334 = vmatpush1.msra.mxu0 0.0
    %335 = vmatprep.subr.mxu0 0.0
    %336 = vmatpush1.msra.mxu0 0.0
    %337 = vmatprep.subr.mxu0 0.0
    %338 = vmatpush1.msra.mxu0 0.0
    %339 = vmatprep.subr.mxu0 0.0
    %340 = vmatpush1.msra.mxu0 0.0
    %341 = vmatprep.subr.mxu0 0.0
    %342 = vmatpush1.msra.mxu0 0.0
    %343 = vmatprep.subr.mxu0 0.0
    %344 = vmatpush1.msra.mxu0 0.0
    %345 = vmatprep.subr.mxu0 0.0
    %346 = vmatpush1.msra.mxu0 0.0
    %347 = vmatprep.subr.mxu0 0.0
    %348 = vmatpush1.msra.mxu0 0.0
    %349 = vmatprep.subr.mxu0 0.0
    %350 = vmatpush1.msra.mxu0 0.0
    %351 = vmatprep.mubr.f32.mxu0 0.0
    %352 = vmatmul.mubr.f32.gmra.mrb[0].mxu0 %v285
    %v353 = vpop.f32.mrb[0].mxu0
    %v354 = vadd.f32 0.0, %v353
    %v355 = vpop.f32.mrb[0].mxu0
    %356 = vdwg.mxu0
    %v358 = vrot.slane %v354, 4
    %v360 = vadd.f32 %v105, %v358
    %v361 = vmax.f32 %v360, 0.0
    %v363 = vrot.slane %v361, 4
    %v365 = vsel %vm119, %v363, %v283
    %v367 = vsel %vm125, %v365, 0
    %369 = vmatprep.subr.mxu0 0.0
    %370 = vmatpush1.msra.mxu0 %v16
    %371 = vmatprep.subr.mxu0 0.0
    %372 = vmatpush1.msra.mxu0 %v17
    %373 = vmatprep.subr.mxu0 0.0
    %374 = vmatpush1.msra.mxu0 %v18
    %375 = vmatprep.subr.mxu0 0.0
    %376 = vmatpush1.msra.mxu0 %v19
    %377 = vmatprep.subr.mxu0 0.0
    %378 = vmatpush1.msra.mxu0 0.0
    %379 = vmatprep.subr.mxu0 0.0
    %380 = vmatpush1.msra.mxu0 0.0
    %381 = vmatprep.subr.mxu0 0.0
    %382 = vmatpush1.msra.mxu0 0.0
    %383 = vmatprep.subr.mxu0 0.0
    %384 = vmatpush1.msra.mxu0 0.0
    %385 = vmatprep.subr.mxu0 0.0
    %386 = vmatpush1.msra.mxu0 0.0
    %387 = vmatprep.subr.mxu0 0.0
    %388 = vmatpush1.msra.mxu0 0.0
    %389 = vmatprep.subr.mxu0 0.0
    %390 = vmatpush1.msra.mxu0 0.0
    %391 = vmatprep.subr.mxu0 0.0
    %392 = vmatpush1.msra.mxu0 0.0
    %393 = vmatprep.subr.mxu0 0.0
    %394 = vmatpush1.msra.mxu0 0.0
    %395 = vmatprep.subr.mxu0 0.0
    %396 = vmatpush1.msra.mxu0 0.0
    %397 = vmatprep.subr.mxu0 0.0
    %398 = vmatpush1.msra.mxu0 0.0
    %399 = vmatprep.subr.mxu0 0.0
    %400 = vmatpush1.msra.mxu0 0.0
    %401 = vmatprep.subr.mxu0 0.0
    %402 = vmatpush1.msra.mxu0 0.0
    %403 = vmatprep.subr.mxu0 0.0
    %404 = vmatpush1.msra.mxu0 0.0
    %405 = vmatprep.subr.mxu0 0.0
    %406 = vmatpush1.msra.mxu0 0.0
    %407 = vmatprep.subr.mxu0 0.0
    %408 = vmatpush1.msra.mxu0 0.0
    %409 = vmatprep.subr.mxu0 0.0
    %410 = vmatpush1.msra.mxu0 0.0
    %411 = vmatprep.subr.mxu0 0.0
    %412 = vmatpush1.msra.mxu0 0.0
    %413 = vmatprep.subr.mxu0 0.0
    %414 = vmatpush1.msra.mxu0 0.0
    %415 = vmatprep.subr.mxu0 0.0
    %416 = vmatpush1.msra.mxu0 0.0
    %417 = vmatprep.subr.mxu0 0.0
    %418 = vmatpush1.msra.mxu0 0.0
    %419 = vmatprep.subr.mxu0 0.0
    %420 = vmatpush1.msra.mxu0 0.0
    %421 = vmatprep.subr.mxu0 0.0
    %422 = vmatpush1.msra.mxu0 0.0
    %423 = vmatprep.subr.mxu0 0.0
    %424 = vmatpush1.msra.mxu0 0.0
    %425 = vmatprep.subr.mxu0 0.0
    %426 = vmatpush1.msra.mxu0 0.0
    %427 = vmatprep.subr.mxu0 0.0
    %428 = vmatpush1.msra.mxu0 0.0
    %429 = vmatprep.subr.mxu0 0.0
    %430 = vmatpush1.msra.mxu0 0.0
    %431 = vmatprep.subr.mxu0 0.0
    %432 = vmatpush1.msra.mxu0 0.0
    %433 = vmatprep.mubr.f32.mxu0 0.0
    %434 = vmatmul.mubr.f32.gmra.mrb[0].mxu0 %v367
    %v435 = vpop.f32.mrb[0].mxu0
    %v436 = vadd.f32 0.0, %v435
    %v437 = vpop.f32.mrb[0].mxu0
    %438 = vdwg.mxu0
    %v440 = vrot.slane %v436, 2
    %v442 = vadd.f32 %v105, %v440
    %v443 = vmax.f32 %v442, 0.0
    %v445 = vrot.slane %v443, 6
    %v447 = vsel %vm120, %v445, %v365
    %v449 = vsel %vm125, %v447, 0
    %451 = vmatprep.subr.mxu0 0.0
    %452 = vmatpush1.msra.mxu0 %v16
    %453 = vmatprep.subr.mxu0 0.0
    %454 = vmatpush1.msra.mxu0 %v17
    %455 = vmatprep.subr.mxu0 0.0
    %456 = vmatpush1.msra.mxu0 %v18
    %457 = vmatprep.subr.mxu0 0.0
    %458 = vmatpush1.msra.mxu0 %v19
    %459 = vmatprep.subr.mxu0 0.0
    %460 = vmatpush1.msra.mxu0 0.0
    %461 = vmatprep.subr.mxu0 0.0
    %462 = vmatpush1.msra.mxu0 0.0
    %463 = vmatprep.subr.mxu0 0.0
    %464 = vmatpush1.msra.mxu0 0.0
    %465 = vmatprep.subr.mxu0 0.0
    %466 = vmatpush1.msra.mxu0 0.0
    %467 = vmatprep.subr.mxu0 0.0
    %468 = vmatpush1.msra.mxu0 0.0
    %469 = vmatprep.subr.mxu0 0.0
    %470 = vmatpush1.msra.mxu0 0.0
    %471 = vmatprep.subr.mxu0 0.0
    %472 = vmatpush1.msra.mxu0 0.0
    %473 = vmatprep.subr.mxu0 0.0
    %474 = vmatpush1.msra.mxu0 0.0
    %475 = vmatprep.subr.mxu0 0.0
    %476 = vmatpush1.msra.mxu0 0.0
    %477 = vmatprep.subr.mxu0 0.0
    %478 = vmatpush1.msra.mxu0 0.0
    %479 = vmatprep.subr.mxu0 0.0
    %480 = vmatpush1.msra.mxu0 0.0
    %481 = vmatprep.subr.mxu0 0.0
    %482 = vmatpush1.msra.mxu0 0.0
    %483 = vmatprep.subr.mxu0 0.0
    %484 = vmatpush1.msra.mxu0 0.0
    %485 = vmatprep.subr.mxu0 0.0
    %486 = vmatpush1.msra.mxu0 0.0
    %487 = vmatprep.subr.mxu0 0.0
    %488 = vmatpush1.msra.mxu0 0.0
    %489 = vmatprep.subr.mxu0 0.0
    %490 = vmatpush1.msra.mxu0 0.0
    %491 = vmatprep.subr.mxu0 0.0
    %492 = vmatpush1.msra.mxu0 0.0
    %493 = vmatprep.subr.mxu0 0.0
    %494 = vmatpush1.msra.mxu0 0.0
    %495 = vmatprep.subr.mxu0 0.0
    %496 = vmatpush1.msra.mxu0 0.0
    %497 = vmatprep.subr.mxu0 0.0
    %498 = vmatpush1.msra.mxu0 0.0
    %499 = vmatprep.subr.mxu0 0.0
    %500 = vmatpush1.msra.mxu0 0.0
    %501 = vmatprep.subr.mxu0 0.0
    %502 = vmatpush1.msra.mxu0 0.0
    %503 = vmatprep.subr.mxu0 0.0
    %504 = vmatpush1.msra.mxu0 0.0
    %505 = vmatprep.subr.mxu0 0.0
    %506 = vmatpush1.msra.mxu0 0.0
    %507 = vmatprep.subr.mxu0 0.0
    %508 = vmatpush1.msra.mxu0 0.0
    %509 = vmatprep.subr.mxu0 0.0
    %510 = vmatpush1.msra.mxu0 0.0
    %511 = vmatprep.subr.mxu0 0.0
    %512 = vmatpush1.msra.mxu0 0.0
    %513 = vmatprep.subr.mxu0 0.0
    %514 = vmatpush1.msra.mxu0 0.0
    %515 = vmatprep.mubr.f32.mxu0 0.0
    %516 = vmatmul.mubr.f32.gmra.mrb[0].mxu0 %v449
    %v517 = vpop.f32.mrb[0].mxu0
    %v518 = vadd.f32 0.0, %v517
    %v519 = vpop.f32.mrb[0].mxu0
    %520 = vdwg.mxu0
    %v521 = vadd.f32 %v110, %v518
    %v522 = vmax.f32 %v521, 0.0
    %v523 = vsel %vm121, %v522, %v447
    %v525 = vsel %vm125, %v523, 0
    %527 = vmatprep.subr.mxu0 0.0
    %528 = vmatpush1.msra.mxu0 %v16
    %529 = vmatprep.subr.mxu0 0.0
    %530 = vmatpush1.msra.mxu0 %v17
    %531 = vmatprep.subr.mxu0 0.0
    %532 = vmatpush1.msra.mxu0 %v18
    %533 = vmatprep.subr.mxu0 0.0
    %534 = vmatpush1.msra.mxu0 %v19
    %535 = vmatprep.subr.mxu0 0.0
    %536 = vmatpush1.msra.mxu0 0.0
    %537 = vmatprep.subr.mxu0 0.0
    %538 = vmatpush1.msra.mxu0 0.0
    %539 = vmatprep.subr.mxu0 0.0
    %540 = vmatpush1.msra.mxu0 0.0
    %541 = vmatprep.subr.mxu0 0.0
    %542 = vmatpush1.msra.mxu0 0.0
    %543 = vmatprep.subr.mxu0 0.0
    %544 = vmatpush1.msra.mxu0 0.0
    %545 = vmatprep.subr.mxu0 0.0
    %546 = vmatpush1.msra.mxu0 0.0
    %547 = vmatprep.subr.mxu0 0.0
    %548 = vmatpush1.msra.mxu0 0.0
    %549 = vmatprep.subr.mxu0 0.0
    %550 = vmatpush1.msra.mxu0 0.0
    %551 = vmatprep.subr.mxu0 0.0
    %552 = vmatpush1.msra.mxu0 0.0
    %553 = vmatprep.subr.mxu0 0.0
    %554 = vmatpush1.msra.mxu0 0.0
    %555 = vmatprep.subr.mxu0 0.0
    %556 = vmatpush1.msra.mxu0 0.0
    %557 = vmatprep.subr.mxu0 0.0
    %558 = vmatpush1.msra.mxu0 0.0
    %559 = vmatprep.subr.mxu0 0.0
    %560 = vmatpush1.msra.mxu0 0.0
    %561 = vmatprep.subr.mxu0 0.0
    %562 = vmatpush1.msra.mxu0 0.0
    %563 = vmatprep.subr.mxu0 0.0
    %564 = vmatpush1.msra.mxu0 0.0
    %565 = vmatprep.subr.mxu0 0.0
    %566 = vmatpush1.msra.mxu0 0.0
    %567 = vmatprep.subr.mxu0 0.0
    %568 = vmatpush1.msra.mxu0 0.0
    %569 = vmatprep.subr.mxu0 0.0
    %570 = vmatpush1.msra.mxu0 0.0
    %571 = vmatprep.subr.mxu0 0.0
    %572 = vmatpush1.msra.mxu0 0.0
    %573 = vmatprep.subr.mxu0 0.0
    %574 = vmatpush1.msra.mxu0 0.0
    %575 = vmatprep.subr.mxu0 0.0
    %576 = vmatpush1.msra.mxu0 0.0
    %577 = vmatprep.subr.mxu0 0.0
    %578 = vmatpush1.msra.mxu0 0.0
    %579 = vmatprep.subr.mxu0 0.0
    %580 = vmatpush1.msra.mxu0 0.0
    %581 = vmatprep.subr.mxu0 0.0
    %582 = vmatpush1.msra.mxu0 0.0
    %583 = vmatprep.subr.mxu0 0.0
    %584 = vmatpush1.msra.mxu0 0.0
    %585 = vmatprep.subr.mxu0 0.0
    %586 = vmatpush1.msra.mxu0 0.0
    %587 = vmatprep.subr.mxu0 0.0
    %588 = vmatpush1.msra.mxu0 0.0
    %589 = vmatprep.subr.mxu0 0.0
    %590 = vmatpush1.msra.mxu0 0.0
    %591 = vmatprep.mubr.f32.mxu0 0.0
    %592 = vmatmul.mubr.f32.gmra.mrb[0].mxu0 %v525
    %v593 = vpop.f32.mrb[0].mxu0
    %v594 = vadd.f32 0.0, %v593
    %v595 = vpop.f32.mrb[0].mxu0
    %596 = vdwg.mxu0
    %v598 = vrot.slane %v594, 6
    %v600 = vadd.f32 %v110, %v598
    %v601 = vmax.f32 %v600, 0.0
    %v603 = vrot.slane %v601, 2
    %v605 = vsel %vm122, %v603, %v523
    %v607 = vsel %vm125, %v605, 0
    %609 = vmatprep.subr.mxu0 0.0
    %610 = vmatpush1.msra.mxu0 %v16
    %611 = vmatprep.subr.mxu0 0.0
    %612 = vmatpush1.msra.mxu0 %v17
    %613 = vmatprep.subr.mxu0 0.0
    %614 = vmatpush1.msra.mxu0 %v18
    %615 = vmatprep.subr.mxu0 0.0
    %616 = vmatpush1.msra.mxu0 %v19
    %617 = vmatprep.subr.mxu0 0.0
    %618 = vmatpush1.msra.mxu0 0.0
    %619 = vmatprep.subr.mxu0 0.0
    %620 = vmatpush1.msra.mxu0 0.0
    %621 = vmatprep.subr.mxu0 0.0
    %622 = vmatpush1.msra.mxu0 0.0
    %623 = vmatprep.subr.mxu0 0.0
    %624 = vmatpush1.msra.mxu0 0.0
    %625 = vmatprep.subr.mxu0 0.0
    %626 = vmatpush1.msra.mxu0 0.0
    %627 = vmatprep.subr.mxu0 0.0
    %628 = vmatpush1.msra.mxu0 0.0
    %629 = vmatprep.subr.mxu0 0.0
    %630 = vmatpush1.msra.mxu0 0.0
    %631 = vmatprep.subr.mxu0 0.0
    %632 = vmatpush1.msra.mxu0 0.0
    %633 = vmatprep.subr.mxu0 0.0
    %634 = vmatpush1.msra.mxu0 0.0
    %635 = vmatprep.subr.mxu0 0.0
    %636 = vmatpush1.msra.mxu0 0.0
    %637 = vmatprep.subr.mxu0 0.0
    %638 = vmatpush1.msra.mxu0 0.0
    %639 = vmatprep.subr.mxu0 0.0
    %640 = vmatpush1.msra.mxu0 0.0
    %641 = vmatprep.subr.mxu0 0.0
    %642 = vmatpush1.msra.mxu0 0.0
    %643 = vmatprep.subr.mxu0 0.0
    %644 = vmatpush1.msra.mxu0 0.0
    %645 = vmatprep.subr.mxu0 0.0
    %646 = vmatpush1.msra.mxu0 0.0
    %647 = vmatprep.subr.mxu0 0.0
    %648 = vmatpush1.msra.mxu0 0.0
    %649 = vmatprep.subr.mxu0 0.0
    %650 = vmatpush1.msra.mxu0 0.0
    %651 = vmatprep.subr.mxu0 0.0
    %652 = vmatpush1.msra.mxu0 0.0
    %653 = vmatprep.subr.mxu0 0.0
    %654 = vmatpush1.msra.mxu0 0.0
    %655 = vmatprep.subr.mxu0 0.0
    %656 = vmatpush1.msra.mxu0 0.0
    %657 = vmatprep.subr.mxu0 0.0
    %658 = vmatpush1.msra.mxu0 0.0
    %659 = vmatprep.subr.mxu0 0.0
    %660 = vmatpush1.msra.mxu0 0.0
    %661 = vmatprep.subr.mxu0 0.0
    %662 = vmatpush1.msra.mxu0 0.0
    %663 = vmatprep.subr.mxu0 0.0
    %664 = vmatpush1.msra.mxu0 0.0
    %665 = vmatprep.subr.mxu0 0.0
    %666 = vmatpush1.msra.mxu0 0.0
    %667 = vmatprep.subr.mxu0 0.0
    %668 = vmatpush1.msra.mxu0 0.0
    %669 = vmatprep.subr.mxu0 0.0
    %670 = vmatpush1.msra.mxu0 0.0
    %671 = vmatprep.subr.mxu0 0.0
    %672 = vmatpush1.msra.mxu0 0.0
    %673 = vmatprep.mubr.f32.mxu0 0.0
    %674 = vmatmul.mubr.f32.gmra.mrb[0].mxu0 %v607
    %v675 = vpop.f32.mrb[0].mxu0
    %v676 = vadd.f32 0.0, %v675
    %v677 = vpop.f32.mrb[0].mxu0
    %678 = vdwg.mxu0
    %v680 = vrot.slane %v676, 4
    %v682 = vadd.f32 %v110, %v680
    %v683 = vmax.f32 %v682, 0.0
    %v685 = vrot.slane %v683, 4
    %v687 = vsel %vm123, %v685, %v605
    %v689 = vsel %vm125, %v687, 0
    %691 = vmatprep.subr.mxu0 0.0
    %692 = vmatpush1.msra.mxu0 %v16
    %693 = vmatprep.subr.mxu0 0.0
    %694 = vmatpush1.msra.mxu0 %v17
    %695 = vmatprep.subr.mxu0 0.0
    %696 = vmatpush1.msra.mxu0 %v18
    %697 = vmatprep.subr.mxu0 0.0
    %698 = vmatpush1.msra.mxu0 %v19
    %699 = vmatprep.subr.mxu0 0.0
    %700 = vmatpush1.msra.mxu0 0.0
    %701 = vmatprep.subr.mxu0 0.0
    %702 = vmatpush1.msra.mxu0 0.0
    %703 = vmatprep.subr.mxu0 0.0
    %704 = vmatpush1.msra.mxu0 0.0
    %705 = vmatprep.subr.mxu0 0.0
    %706 = vmatpush1.msra.mxu0 0.0
    %707 = vmatprep.subr.mxu0 0.0
    %708 = vmatpush1.msra.mxu0 0.0
    %709 = vmatprep.subr.mxu0 0.0
    %710 = vmatpush1.msra.mxu0 0.0
    %711 = vmatprep.subr.mxu0 0.0
    %712 = vmatpush1.msra.mxu0 0.0
    %713 = vmatprep.subr.mxu0 0.0
    %714 = vmatpush1.msra.mxu0 0.0
    %715 = vmatprep.subr.mxu0 0.0
    %716 = vmatpush1.msra.mxu0 0.0
    %717 = vmatprep.subr.mxu0 0.0
    %718 = vmatpush1.msra.mxu0 0.0
    %719 = vmatprep.subr.mxu0 0.0
    %720 = vmatpush1.msra.mxu0 0.0
    %721 = vmatprep.subr.mxu0 0.0
    %722 = vmatpush1.msra.mxu0 0.0
    %723 = vmatprep.subr.mxu0 0.0
    %724 = vmatpush1.msra.mxu0 0.0
    %725 = vmatprep.subr.mxu0 0.0
    %726 = vmatpush1.msra.mxu0 0.0
    %727 = vmatprep.subr.mxu0 0.0
    %728 = vmatpush1.msra.mxu0 0.0
    %729 = vmatprep.subr.mxu0 0.0
    %730 = vmatpush1.msra.mxu0 0.0
    %731 = vmatprep.subr.mxu0 0.0
    %732 = vmatpush1.msra.mxu0 0.0
    %733 = vmatprep.subr.mxu0 0.0
    %734 = vmatpush1.msra.mxu0 0.0
    %735 = vmatprep.subr.mxu0 0.0
    %736 = vmatpush1.msra.mxu0 0.0
    %737 = vmatprep.subr.mxu0 0.0
    %738 = vmatpush1.msra.mxu0 0.0
    %739 = vmatprep.subr.mxu0 0.0
    %740 = vmatpush1.msra.mxu0 0.0
    %741 = vmatprep.subr.mxu0 0.0
    %742 = vmatpush1.msra.mxu0 0.0
    %743 = vmatprep.subr.mxu0 0.0
    %744 = vmatpush1.msra.mxu0 0.0
    %745 = vmatprep.subr.mxu0 0.0
    %746 = vmatpush1.msra.mxu0 0.0
    %747 = vmatprep.subr.mxu0 0.0
    %748 = vmatpush1.msra.mxu0 0.0
    %749 = vmatprep.subr.mxu0 0.0
    %750 = vmatpush1.msra.mxu0 0.0
    %751 = vmatprep.subr.mxu0 0.0
    %752 = vmatpush1.msra.mxu0 0.0
    %753 = vmatprep.subr.mxu0 0.0
    %754 = vmatpush1.msra.mxu0 0.0
    %755 = vmatprep.mubr.f32.mxu0 0.0
    %756 = vmatmul.mubr.f32.gmra.mrb[0].mxu0 %v689
    %v757 = vpop.f32.mrb[0].mxu0
    %v758 = vadd.f32 0.0, %v757
    %v759 = vpop.f32.mrb[0].mxu0
    %760 = vdwg.mxu0
    %v762 = vrot.slane %v758, 2
    %v764 = vadd.f32 %v110, %v762
    %v765 = vmax.f32 %v764, 0.0
    %v767 = vrot.slane %v765, 6
    %v769 = vsel %vm124, %v767, %v687
    %v770 = vld [vmem:[%s2 + $0x30] sm:$0xff]
    %v771 = vld [vmem:[%s2 + $0x38] sm:$0xff]
    %v772 = vld [vmem:[%s2 + $0x40] sm:$0xff]
    %v773 = vld [vmem:[%s2 + $0x48] sm:$0xff]
    %v774 = vld [vmem:[%s2 + $0x50] sm:$0x1]
    %v775 = vlaneseq
    %v776 = vshrl.u32 %v775, 7
    %v777 = vsub.s32 0, %v776
    %v778 = vrot.slane %v774, %v777
    %v780 = vsel %vm125, %v769, 0
    %782 = vmatprep.subr.mxu0 0.0
    %783 = vmatpush1.msra.mxu0 %v770
    %784 = vmatprep.subr.mxu0 0.0
    %785 = vmatpush1.msra.mxu0 %v771
    %786 = vmatprep.subr.mxu0 0.0
    %787 = vmatpush1.msra.mxu0 %v772
    %788 = vmatprep.subr.mxu0 0.0
    %789 = vmatpush1.msra.mxu0 %v773
    %790 = vmatprep.subr.mxu0 0.0
    %791 = vmatpush1.msra.mxu0 0.0
    %792 = vmatprep.subr.mxu0 0.0
    %793 = vmatpush1.msra.mxu0 0.0
    %794 = vmatprep.subr.mxu0 0.0
    %795 = vmatpush1.msra.mxu0 0.0
    %796 = vmatprep.subr.mxu0 0.0
    %797 = vmatpush1.msra.mxu0 0.0
    %798 = vmatprep.subr.mxu0 0.0
    %799 = vmatpush1.msra.mxu0 0.0
    %800 = vmatprep.subr.mxu0 0.0
    %801 = vmatpush1.msra.mxu0 0.0
    %802 = vmatprep.subr.mxu0 0.0
    %803 = vmatpush1.msra.mxu0 0.0
    %804 = vmatprep.subr.mxu0 0.0
    %805 = vmatpush1.msra.mxu0 0.0
    %806 = vmatprep.subr.mxu0 0.0
    %807 = vmatpush1.msra.mxu0 0.0
    %808 = vmatprep.subr.mxu0 0.0
    %809 = vmatpush1.msra.mxu0 0.0
    %810 = vmatprep.subr.mxu0 0.0
    %811 = vmatpush1.msra.mxu0 0.0
    %812 = vmatprep.subr.mxu0 0.0
    %813 = vmatpush1.msra.mxu0 0.0
    %814 = vmatprep.subr.mxu0 0.0
    %815 = vmatpush1.msra.mxu0 0.0
    %816 = vmatprep.subr.mxu0 0.0
    %817 = vmatpush1.msra.mxu0 0.0
    %818 = vmatprep.subr.mxu0 0.0
    %819 = vmatpush1.msra.mxu0 0.0
    %820 = vmatprep.subr.mxu0 0.0
    %821 = vmatpush1.msra.mxu0 0.0
    %822 = vmatprep.subr.mxu0 0.0
    %823 = vmatpush1.msra.mxu0 0.0
    %824 = vmatprep.subr.mxu0 0.0
    %825 = vmatpush1.msra.mxu0 0.0
    %826 = vmatprep.subr.mxu0 0.0
    %827 = vmatpush1.msra.mxu0 0.0
    %828 = vmatprep.subr.mxu0 0.0
    %829 = vmatpush1.msra.mxu0 0.0
    %830 = vmatprep.subr.mxu0 0.0
    %831 = vmatpush1.msra.mxu0 0.0
    %832 = vmatprep.subr.mxu0 0.0
    %833 = vmatpush1.msra.mxu0 0.0
    %834 = vmatprep.subr.mxu0 0.0
    %835 = vmatpush1.msra.mxu0 0.0
    %836 = vmatprep.subr.mxu0 0.0
    %837 = vmatpush1.msra.mxu0 0.0
    %838 = vmatprep.subr.mxu0 0.0
    %839 = vmatpush1.msra.mxu0 0.0
    %840 = vmatprep.subr.mxu0 0.0
    %841 = vmatpush1.msra.mxu0 0.0
    %842 = vmatprep.subr.mxu0 0.0
    %843 = vmatpush1.msra.mxu0 0.0
    %844 = vmatprep.subr.mxu0 0.0
    %845 = vmatpush1.msra.mxu0 0.0
    %846 = vmatprep.mubr.f32.mxu0 0.0
    %847 = vmatmul.mubr.f32.gmra.mrb[0].mxu0 %v780
    %v848 = vpop.f32.mrb[0].mxu0
    %v849 = vadd.f32 %v778, %v848
    %v850 = vpop.f32.mrb[0].mxu0
    %851 = vdwg.mxu0
    %vm852 = vcmask 58368
    %v853 = vsel %vm852, %v849, -inf
    %854 = vmax.xlane.f32.xlu0 %v853
    %v855 = vpop.xlane.xlu0 %854
    %v856 = vsub.f32 %v849, %v855
    %v857 = vmul.f32 %v856, 1.442695
    %v858 = vpow.pop %v857
    %v859 = vsel %vm852, %v858, 0.0
    %860 = vadd.xlane.f32.xlu0 %v859
    %v861 = vpop.xlane.xlu0 %860
    %v862 = vlog2.pop %v861
    %v863 = vmul.f32 %v862, 0.6931472
    %v864 = vsub.f32 %v856, %v863
    %865 = vst.msk [vmem:[#allocation2] sm:$0x3] %vm852, %v864
    // Predicated region
    $region14: #{tpu_custom_call.1} parent=1 // pred_check
      _
    $region15: #{tpu_custom_call.1} parent=1 // pred_check_branch
      %867 = sbr.rel (0) target = $region17
    $region16: #{tpu_custom_call.1} parent=1 // pred_region
      %s869 = ssub.s32 32, 32
      %870 = vsyncadd [#allocation3], %s869
      %s872 = sshll.u32 [#allocation2], 4
      %s873 = int_to_ptr.vmem [resolvable:$true] %s872
      %875 = dma.vmem_to_hbm [thread:$0]  %s873, 32, %s3, [#allocation3]
    $region17: #{tpu_custom_call.1} parent=1 // pred_fallthru
      _
    // Predicated region
    $region18: #{tpu_custom_call.1} parent=1 // pred_check
      _
    $region19: #{tpu_custom_call.1} parent=1 // pred_check_branch
      %877 = sbr.rel (0) target = $region21
    $region20: #{tpu_custom_call.1} parent=1 // pred_region
      %878 = dma.done [#allocation3], 32
    $region21: #{tpu_custom_call.1} parent=1 // pred_fallthru
      _
    %879 = vsyncpa [#allocation3], 1

</llo_original>
